<compile_context>
chip_gen: v7x
topology: tpu7x:2x2x1
jax: 0.10.0
libtpu: 0.0.40
codegen_flags: <defaults>
</compile_context>

<pallas_src>
import functools
import math

import jax
import jax.numpy as jnp
from jax.experimental import pallas as pl
from jax.experimental.pallas import tpu as pltpu


def _quantize_kernel(x_ref, o_ref, *, n):
    # f32 compute regardless of input dtype: free slack on a mem-bound kernel,
    # and protects bf16 inputs for k >= 8 (x*n exceeds the bf16 mantissa).
    x = x_ref[...].astype(jnp.float32)
    # Divide by n (not multiply by 1/n) for bit-exact parity with torch's
    # `input.round() / n`; jnp.round matches torch.round (half-to-even).
    # Note: for k >= ~24, x*n exceeds f32's exact-integer range -- this
    # matches PyTorch f32 behavior, so parity still holds.
    o_ref[...] = (jnp.round(x * n) / n).astype(o_ref.dtype)


def _block_params():
    """Generation-aware (block_bytes, vmem_limit_bytes)."""
    try:
        vmem_cap = pltpu.get_tpu_info().vmem_capacity_bytes
    except Exception:
        return 2 * 1024 * 1024, None          # safe fallback (default scoped limit)
    if vmem_cap is None:
        return 2 * 1024 * 1024, None
    if vmem_cap < 100 * 1024 * 1024:
        # v7x: 64 MiB VMEM/TC but ~3.2 TB/s HBM -> bigger blocks to amortize
        # the ~0.35us per-grid-step overhead. 2 specs x 2 bufs x 8 MiB = 32 MiB.
        return 8 * 1024 * 1024, 40 * 1024 * 1024
    # v5e / v6e: 128 MiB physical VMEM. 4 MiB blocks (16 MiB footprint) need an
    # explicit limit on v5e (16 MiB scoped default) -- raise it for both.
    return 4 * 1024 * 1024, 32 * 1024 * 1024


def _launch(x_arr, block_shape, index_map, grid, n, vmem_limit):
    itemsize = jnp.dtype(x_arr.dtype).itemsize
    cost = pl.CostEstimate(
        flops=2 * x_arr.size,                       # one mul + one div / element
        transcendentals=0,
        bytes_accessed=2 * x_arr.size * itemsize,   # read + write, mem-bound
    )
    return pl.pallas_call(
        functools.partial(_quantize_kernel, n=n),
        out_shape=jax.ShapeDtypeStruct(x_arr.shape, x_arr.dtype),
        grid_spec=pltpu.PrefetchScalarGridSpec(
            num_scalar_prefetch=0,
            grid=grid,
            in_specs=[pl.BlockSpec(block_shape, index_map)],
            out_specs=pl.BlockSpec(block_shape, index_map),
        ),
        compiler_params=pltpu.CompilerParams(
            dimension_semantics=("parallel",),
            vmem_limit_bytes=vmem_limit,
        ),
        # Same shape/dtype elementwise op: reuse the input buffer (realized
        # in-place when the caller donates x at the jit boundary).
        input_output_aliases={0: 0},
        cost_estimate=cost,
    )(x_arr)


def quantizer_forward(x, k):
    """Pallas implementation of Quantizer(k).forward(x). k is a static int."""
    # TODO(synk): when this quantizer always follows another Pallas kernel
    # (conv/matmul activations), fuse round(x*n)/n into that kernel's epilogue
    # instead of paying a standalone HBM read+write pass.
    n = float(2 ** k - 1)
    orig_shape = x.shape
    total = x.size
    if total == 0:
        return x

    itemsize = jnp.dtype(x.dtype).itemsize
    # Sublane multiple for the packed dtype: 8 (f32), 16 (bf16), 32 (int8/fp8).
    sub_mult = max(8, (8 * 4) // itemsize)
    block_bytes, vmem_limit = _block_params()

    lane = 128
    if total % lane == 0:
        # ---- aligned fast path: lane-dense 2D slab --------------------------
        slab_lane = next(c for c in (1024, 512, 256, 128) if total % c == 0)
        rows = total // slab_lane
        x2d = x.reshape(rows, slab_lane)

        block_rows = block_bytes // (slab_lane * itemsize)
        block_rows = max(sub_mult, (block_rows // sub_mult) * sub_mult)
        if block_rows >= rows:
            if rows >= 2 * sub_mult:
                # Split into >=2 grid steps so v7x's two TensorCores both get
                # work (harmless ~0.35us extra step on single-TC v5e/v6e).
                half = pl.cdiv(rows, 2)
                block_rows = ((half + sub_mult - 1) // sub_mult) * sub_mult
            else:
                block_rows = rows  # single full-extent block (exempt from 8/128)
        grid = (pl.cdiv(rows, block_rows),)
        out2d = _launch(x2d, (block_rows, slab_lane), lambda i: (i, 0),
                        grid, n, vmem_limit)
        return out2d.reshape(orig_shape)

    # ---- misaligned path: original shape, zero extra pad/slice copies -------
    # Trailing dims stay at full extent (exempt from the (8,128) rule); only
    # the leading dim is tiled.
    x_in = x if x.ndim >= 2 else x.reshape(1, total)
    shape = x_in.shape
    ndim_in = x_in.ndim
    rest_bytes = math.prod(shape[1:]) * itemsize
    b0 = max(1, block_bytes // max(1, rest_bytes))
    b0 = min(b0, shape[0])
    if ndim_in == 2 and b0 < shape[0]:
        # b0 is then the second-to-last block dim -> multiple of 8 or full.
        b0 = shape[0] if shape[0] < 8 else min(shape[0], max(8, (b0 // 8) * 8))
    # TODO(synk): a single trailing slab larger than VMEM (huge misaligned
    # trailing dims) would need an in-kernel length mask on a flat view.
    block_shape = (b0,) + shape[1:]
    index_map = lambda i: (i,) + (0,) * (ndim_in - 1)
    grid = (pl.cdiv(shape[0], b0),)
    out = _launch(x_in, block_shape, index_map, grid, n, vmem_limit)
    return out.reshape(orig_shape)


if __name__ == "__main__":
    key = jax.random.PRNGKey(0)
    # Small NCHW input consistent with a conv-feature-map use of Quantizer.
    x = jax.random.uniform(key, (2, 4, 16, 16), dtype=jnp.float32)
    k_bits = 4  # Quantizer(k=4)

    # Reference (plain JAX, same semantics as the PyTorch forward) computed
    # BEFORE donating x to the kernel call.
    n_ref = float(2 ** k_bits - 1)
    ref = jnp.round(x * n_ref) / n_ref
    expected_shape, expected_dtype = x.shape, x.dtype

    # Donate x so the input/output aliasing inside the kernel is in-place.
    qf = jax.jit(quantizer_forward, static_argnums=(1,), donate_argnums=(0,))
    out = jax.block_until_ready(qf(x, k_bits))

    assert out.shape == expected_shape and out.dtype == expected_dtype
    assert jnp.allclose(out, ref, atol=1e-6), "mismatch vs reference"
    print("KERNEL_OK")
</pallas_src>

<mosaic_0001>
module attributes {stable_mosaic.version = 11 : i64} {
  func.func @_quantize_kernel(%arg0: i32, %arg1: memref<2x1024xf32, #tpu.memory_space<vmem>>, %arg2: memref<2x1024xf32, #tpu.memory_space<vmem>>) attributes {dimension_semantics = [#tpu.dimension_semantics<parallel>], iteration_bounds = array<i64: 1>, scalar_prefetch = 0 : i64, scratch_operands = 0 : i64, tpu.core_type = #tpu.core_type<tc>, window_params = [{transform_indices = @transform_0, window_bounds = array<i64: 2, 1024>}, {transform_indices = @transform_1, window_bounds = array<i64: 2, 1024>}]} {
    %c0 = arith.constant 0 : index
    %c0_0 = arith.constant 0 : index
    %0 = vector.load %arg1[%c0, %c0_0] : memref<2x1024xf32, #tpu.memory_space<vmem>>, vector<2x1024xf32>
    %cst = arith.constant 1.500000e+01 : f32
    %1 = vector.broadcast %cst : f32 to vector<2x1024xf32>
    %2 = arith.mulf %0, %1 : vector<2x1024xf32>
    %3 = math.roundeven %2 : vector<2x1024xf32>
    %cst_1 = arith.constant 1.500000e+01 : f32
    %4 = vector.broadcast %cst_1 : f32 to vector<2x1024xf32>
    %5 = arith.divf %3, %4 : vector<2x1024xf32>
    %c0_2 = arith.constant 0 : index
    %c0_3 = arith.constant 0 : index
    %6 = vector.load %arg2[%c0_2, %c0_3] : memref<2x1024xf32, #tpu.memory_space<vmem>>, vector<2x1024xf32>
    tpu.vector_store %arg2[%c0_2, %c0_3], %5 {strides = array<i32>} : memref<2x1024xf32, #tpu.memory_space<vmem>>, vector<2x1024xf32>,
    return
  }
  func.func @transform_0(%arg0: i32) -> (i32, i32) {
    %c0_i32 = arith.constant 0 : i32
    %c0_i32_0 = arith.constant 0 : i32
    return %arg0, %c0_i32 : i32, i32
  }
  func.func @transform_1(%arg0: i32) -> (i32, i32) {
    %c0_i32 = arith.constant 0 : i32
    %c0_i32_0 = arith.constant 0 : i32
    return %arg0, %c0_i32 : i32, i32
  }
}

</mosaic_0001>

<llo_original>
// kernel: quantizer_forward.1
$region0: #{quantizer_forward.1}
  #allocation0 [shape = 'u32[]', space=smem, size = 0x4, offset = 0x4, fixed_abs, tag = 'smem constant byte address 0x4 - core index']
  #allocation1 [shape = 'u32[144,128]{1,0:T(1,128)}', space=vmem, size = 0x12000, scoped, tag = 'internal scratch']
  %s0 = inlined_call_operand.vmem [shape: f32[2,1024], index: 0, kind: input, shape index: {}, may-alias: {0,1}]
  %s1 = inlined_call_operand.vmem [shape: f32[2,1024], index: 1, kind: output, shape index: {}, may-alias: {0,1}]
  %s2 = sld [smem:[#allocation0]]
  $region14: #{quantizer_forward.1} parent=0
    _
  %s4 = ssub.s32 1, %s2
  %s5 = scalar_select 0, %s4, %s2
  // Predicated region
  $region2: #{quantizer_forward.1} parent=0 // pred_check
    _
  $region3: #{quantizer_forward.1} parent=0 // pred_check_branch
    %7 = sbr.rel (0) target = $region5
  $region4: #{quantizer_forward.1} parent=0 // pred_region
    _
  $region5: #{quantizer_forward.1} parent=0 // pred_fallthru
    _
  %v8 = vld [vmem:[%s0] sm:$0xff]
  %v9 = vld [vmem:[%s0 + $0x8] sm:$0xff]
  %v10 = vmul.f32 %v8, 15.0
  %v11 = vmul.f32 %v9, 15.0
  %v12 = vround.ne.pseudo %v10
  %v13 = vround.ne.pseudo %v11
  %v14 = vrcp.pop 15.0
  %v15 = vmul.f32 %v12, %v14
  %v16 = vmul.f32 %v13, %v14
  %17 = vst [vmem:[%s1] sm:$0xff] %v15
  %18 = vst [vmem:[%s1 + $0x8] sm:$0xff] %v16
  // Predicated region
  $region6: #{quantizer_forward.1} parent=0 // pred_check
    _
  $region7: #{quantizer_forward.1} parent=0 // pred_check_branch
    %20 = sbr.rel (0) target = $region9
  $region8: #{quantizer_forward.1} parent=0 // pred_region
    _
  $region9: #{quantizer_forward.1} parent=0 // pred_fallthru
    _
  // Predicated region
  $region10: #{quantizer_forward.1} parent=0 // pred_check
    _
  $region11: #{quantizer_forward.1} parent=0 // pred_check_branch
    %22 = sbr.rel (0) target = $region13
  $region12: #{quantizer_forward.1} parent=0 // pred_region
    _
  $region13: #{quantizer_forward.1} parent=0 // pred_fallthru
    _

</llo_original>
